<compile_context>
chip_gen: v7x
topology: tpu7x:2x2x1
jax: 0.10.0
libtpu: 0.0.40
codegen_flags: <defaults>
</compile_context>

<pallas_src>
import functools

import jax
import jax.numpy as jnp
from jax import lax
from jax.experimental import pallas as pl
from jax.experimental.pallas import tpu as pltpu


def _my_conv1d_kernel(x_ref, w_ref, b_ref, o_ref, *, kernel_size, af,
                      softmax_axis):
    tb, n_pad, in_c = x_ref.shape
    _, out_len, out_c = o_ref.shape

    x = x_ref[...]                                       # (TB, n_pad, in_c)

    # Conv1d (stride=1) as a sum of k shifted matmuls with M = TB * out_len.
    def tap(j):
        xs = x[:, j:j + out_len, :] if kernel_size > 1 else x
        return jnp.dot(xs.reshape(tb * out_len, in_c), w_ref[j],
                       preferred_element_type=jnp.float32)

    acc = tap(0)
    for j in range(1, kernel_size):
        acc = acc + tap(j)
    acc = acc + b_ref[...]                               # (1, out_c) broadcast
    y = acc.reshape(tb, out_len, out_c)

    if af == "softmax":
        m = jnp.max(y, axis=softmax_axis, keepdims=True)
        e = jnp.exp(y - m)
        s = jnp.sum(e, axis=softmax_axis, keepdims=True)
        y = e * pl.reciprocal(s, approx=False)
    elif af == "tanh":
        y = jnp.tanh(y)
    elif af == "relu":
        y = jnp.maximum(y, 0.0)
    elif af == "sigmoid":
        y = jax.nn.sigmoid(y)
    # TODO(synk): other torch.nn.functional activations are not mapped.

    o_ref[...] = y.astype(o_ref.dtype)


def my_conv1d(x, weight, bias, *, stride=1, padding=0, p=None, af=None,
              dim=None, batch_tile=None):
    """Pallas MyConv1d.forward (eval mode).

    x      : (b, n, in_channels)                float32
    weight : (out_channels, in_channels, k)     PyTorch Conv1d layout
    bias   : (out_channels,)
    Returns (b, L, out_channels) with L = (n + 2*padding - k)//stride + 1.
    """
    if x.ndim != 3:
        raise ValueError("input must be rank-3 (b, n, in_channels)")
    if stride != 1:
        # TODO(synk): strided Conv1d is not implemented in the Pallas kernel.
        raise NotImplementedError("only stride=1 is supported")
    del p  # TODO(synk): dropout (self.p) is an eval-mode no-op here.

    b, n, in_c = x.shape
    out_c, w_in_c, k = weight.shape
    assert w_in_c == in_c, "weight in_channels mismatch"

    if padding:
        x = jnp.pad(x, ((0, 0), (padding, padding), (0, 0)))
    n_pad = n + 2 * padding
    out_len = n_pad - k + 1

    softmax_axis = None
    if af == "softmax":
        if dim is None:
            raise ValueError("softmax activation requires dim")
        softmax_axis = dim if dim >= 0 else dim + 3
        if softmax_axis not in (1, 2):
            raise NotImplementedError("softmax over the batch dim unsupported")

    # (out_c, in_c, k) -> (k, in_c, out_c): lane-aligned contraction axis,
    # out_c on the result lane axis (one-time transpose outside the kernel).
    w_t = jnp.transpose(weight, (2, 1, 0))
    b2 = bias.reshape(1, out_c)

    # ---- batch tiling: fold TB batch elements into the matmul M dim. ----
    if batch_tile is None:
        tb = max(1, min(b, (512 + out_len - 1) // max(out_len, 1)))
        per_b_bytes = 4 * (n_pad * in_c + out_len * out_c)
        tb = max(1, min(tb, (8 << 20) // max(per_b_bytes, 1)))  # VMEM budget
        if b > 1 and tb >= b:
            tb = (b + 1) // 2          # >= 2 grid steps -> both v7x TCs busy
    else:
        tb = max(1, min(batch_tile, b))
    b_pad = ((b + tb - 1) // tb) * tb
    if b_pad != b:
        x = jnp.pad(x, ((0, b_pad - b), (0, 0), (0, 0)))
    grid = (b_pad // tb,)

    # Scoped-VMEM budget: 2 pipeline buffers per tensor + weights + headroom.
    vmem_bytes = (2 * 4 * tb * (n_pad * in_c + out_len * out_c)
                  + 4 * (k * in_c * out_c + out_c) + (4 << 20))
    vmem_limit = int(min(max(vmem_bytes, 32 << 20), 64 << 20))

    kernel = functools.partial(_my_conv1d_kernel, kernel_size=k, af=af,
                               softmax_axis=softmax_axis)

    y = pl.pallas_call(
        kernel,
        out_shape=jax.ShapeDtypeStruct((b_pad, out_len, out_c), x.dtype),
        grid_spec=pltpu.PrefetchScalarGridSpec(
            num_scalar_prefetch=0,
            grid=grid,
            in_specs=[
                pl.BlockSpec((tb, n_pad, in_c), lambda i: (i, 0, 0)),
                pl.BlockSpec((k, in_c, out_c), lambda i: (0, 0, 0)),
                pl.BlockSpec((1, out_c), lambda i: (0, 0)),
            ],
            out_specs=pl.BlockSpec((tb, out_len, out_c), lambda i: (i, 0, 0)),
        ),
        compiler_params=pltpu.CompilerParams(
            dimension_semantics=("parallel",),
            vmem_limit_bytes=vmem_limit),
    )(x, w_t, b2)

    return y[:b] if b_pad != b else y


def _reference(x, weight, bias, *, stride=1, padding=0, af=None, dim=None):
    y = lax.conv_general_dilated(
        jnp.transpose(x, (0, 2, 1)), weight,
        window_strides=(stride,), padding=[(padding, padding)],
        dimension_numbers=("NCH", "OIH", "NCH"))
    y = jnp.transpose(y, (0, 2, 1)) + bias
    if af == "softmax":
        y = jax.nn.softmax(y, axis=dim)
    elif af == "tanh":
        y = jnp.tanh(y)
    elif af == "relu":
        y = jax.nn.relu(y)
    elif af == "sigmoid":
        y = jax.nn.sigmoid(y)
    return y


if __name__ == "__main__":
    key = jax.random.PRNGKey(0)
    k1, k2, k3, k4, k5, k6 = jax.random.split(key, 6)

    # Config A: attention-style use — MyConv1d(32, 16, 1, af='softmax', dim=1)
    b, n, in_c, out_c = 8, 64, 32, 16
    x = jax.random.normal(k1, (b, n, in_c), dtype=jnp.float32)
    w = 0.1 * jax.random.normal(k2, (out_c, in_c, 1), dtype=jnp.float32)
    bb = 0.1 * jax.random.normal(k3, (out_c,), dtype=jnp.float32)

    y = jax.block_until_ready(my_conv1d(x, w, bb, af="softmax", dim=1))
    y_ref = _reference(x, w, bb, af="softmax", dim=1)
    assert y.shape == (b, n, out_c)
    assert jnp.allclose(y, y_ref, atol=1e-5, rtol=1e-5)

    # Config B: plain k=1 projection + tanh — MyConv1d(32, 32, 1, af='tanh')
    b2_, n2_, in2_, out2_ = 4, 32, 32, 32
    x2 = jax.random.normal(k4, (b2_, n2_, in2_), dtype=jnp.float32)
    w2 = 0.1 * jax.random.normal(k5, (out2_, in2_, 1), dtype=jnp.float32)
    bb2 = 0.1 * jax.random.normal(k6, (out2_,), dtype=jnp.float32)

    y2 = jax.block_until_ready(my_conv1d(x2, w2, bb2, af="tanh"))
    y2_ref = _reference(x2, w2, bb2, af="tanh")
    assert y2.shape == (b2_, n2_, out2_)
    assert jnp.allclose(y2, y2_ref, atol=1e-5, rtol=1e-5)

    print("KERNEL_OK")
</pallas_src>

<mosaic_0001>
module attributes {stable_mosaic.version = 11 : i64} {
  func.func @_my_conv1d_kernel(%arg0: i32, %arg1: memref<4x64x32xf32, #tpu.memory_space<vmem>>, %arg2: memref<1x32x16xf32, #tpu.memory_space<vmem>>, %arg3: memref<1x16xf32, #tpu.memory_space<vmem>>, %arg4: memref<4x64x16xf32, #tpu.memory_space<vmem>>) attributes {dimension_semantics = [#tpu.dimension_semantics<parallel>], iteration_bounds = array<i64: 2>, scalar_prefetch = 0 : i64, scratch_operands = 0 : i64, tpu.core_type = #tpu.core_type<tc>, window_params = [{transform_indices = @transform_0, window_bounds = array<i64: 4, 64, 32>}, {pipeline_mode = #tpu.pipeline_mode<synchronous>, transform_indices = @transform_1, window_bounds = array<i64: 1, 32, 16>}, {pipeline_mode = #tpu.pipeline_mode<synchronous>, transform_indices = @transform_2, window_bounds = array<i64: 1, 16>}, {transform_indices = @transform_3, window_bounds = array<i64: 4, 64, 16>}]} {
    %c0 = arith.constant 0 : index
    %c0_0 = arith.constant 0 : index
    %c0_1 = arith.constant 0 : index
    %0 = vector.load %arg1[%c0, %c0_0, %c0_1] : memref<4x64x32xf32, #tpu.memory_space<vmem>>, vector<4x64x32xf32>
    %1 = vector.shape_cast %0 : vector<4x64x32xf32> to vector<256x32xf32>
    %c0_2 = arith.constant 0 : index
    %c0_3 = arith.constant 0 : index
    %c0_4 = arith.constant 0 : index
    %2 = vector.load %arg2[%c0_2, %c0_3, %c0_4] : memref<1x32x16xf32, #tpu.memory_space<vmem>>, vector<1x32x16xf32>
    %3 = vector.shape_cast %2 : vector<1x32x16xf32> to vector<32x16xf32>
    %cst = arith.constant dense<0.000000e+00> : vector<256x16xf32>
    %4 = tpu.matmul %1, %3, %cst {dimension_numbers = #tpu.dot_dimension_numbers<[1], [0], [0], [1], [0, 0, 1, 1], [], []>} : vector<256x32xf32>, vector<32x16xf32>, vector<256x16xf32> -> vector<256x16xf32>
    %c0_5 = arith.constant 0 : index
    %c0_6 = arith.constant 0 : index
    %5 = vector.load %arg3[%c0_5, %c0_6] : memref<1x16xf32, #tpu.memory_space<vmem>>, vector<1x16xf32>
    %6 = vector.broadcast %5 : vector<1x16xf32> to vector<256x16xf32>
    %7 = arith.addf %4, %6 : vector<256x16xf32>
    %8 = vector.shape_cast %7 : vector<256x16xf32> to vector<4x64x16xf32>
    %cst_7 = arith.constant dense<0xFF800000> : vector<4x16xf32>
    %9 = vector.multi_reduction <maximumf>, %8, %cst_7 [1] : vector<4x64x16xf32> to vector<4x16xf32>
    %10 = vector.shape_cast %9 : vector<4x16xf32> to vector<4x1x16xf32>
    %11 = vector.broadcast %10 : vector<4x1x16xf32> to vector<4x64x16xf32>
    %12 = arith.subf %8, %11 : vector<4x64x16xf32>
    %13 = math.exp %12 : vector<4x64x16xf32>
    %cst_8 = arith.constant dense<0.000000e+00> : vector<4x16xf32>
    %14 = vector.multi_reduction <add>, %13, %cst_8 [1] : vector<4x64x16xf32> to vector<4x16xf32>
    %15 = vector.shape_cast %14 : vector<4x16xf32> to vector<4x1x16xf32>
    %16 = tpu.reciprocal %15 : vector<4x1x16xf32> -> vector<4x1x16xf32>
    %17 = vector.broadcast %16 : vector<4x1x16xf32> to vector<4x64x16xf32>
    %18 = arith.mulf %13, %17 : vector<4x64x16xf32>
    %c0_9 = arith.constant 0 : index
    %c0_10 = arith.constant 0 : index
    %c0_11 = arith.constant 0 : index
    %19 = vector.load %arg4[%c0_9, %c0_10, %c0_11] : memref<4x64x16xf32, #tpu.memory_space<vmem>>, vector<4x64x16xf32>
    tpu.vector_store %arg4[%c0_9, %c0_10, %c0_11], %18 {strides = array<i32>} : memref<4x64x16xf32, #tpu.memory_space<vmem>>, vector<4x64x16xf32>,
    return
  }
  func.func @transform_0(%arg0: i32) -> (i32, i32, i32) {
    %c0_i32 = arith.constant 0 : i32
    %c0_i32_0 = arith.constant 0 : i32
    %c0_i32_1 = arith.constant 0 : i32
    return %arg0, %c0_i32, %c0_i32_0 : i32, i32, i32
  }
  func.func @transform_1(%arg0: i32) -> (i32, i32, i32) {
    %c0_i32 = arith.constant 0 : i32
    %c0_i32_0 = arith.constant 0 : i32
    %c0_i32_1 = arith.constant 0 : i32
    %c0_i32_2 = arith.constant 0 : i32
    return %c0_i32, %c0_i32_0, %c0_i32_1 : i32, i32, i32
  }
  func.func @transform_2(%arg0: i32) -> (i32, i32) {
    %c0_i32 = arith.constant 0 : i32
    %c0_i32_0 = arith.constant 0 : i32
    %c0_i32_1 = arith.constant 0 : i32
    return %c0_i32, %c0_i32_0 : i32, i32
  }
  func.func @transform_3(%arg0: i32) -> (i32, i32, i32) {
    %c0_i32 = arith.constant 0 : i32
    %c0_i32_0 = arith.constant 0 : i32
    %c0_i32_1 = arith.constant 0 : i32
    return %arg0, %c0_i32, %c0_i32_0 : i32, i32, i32
  }
}

</mosaic_0001>

<llo_original>
// kernel: tpu_custom_call.1
$region0: #{tpu_custom_call.1}
  #allocation0 [shape = 'u32[]', space=smem, size = 0x4, offset = 0x4, fixed_abs, tag = 'smem constant byte address 0x4 - core index']
  #allocation1 [shape = 'u32[144,128]{1,0:T(1,128)}', space=vmem, size = 0x12000, scoped, tag = 'internal scratch']
  %s0 = inlined_call_operand.vmem [shape: f32[8,64,32], index: 0, kind: input, shape index: {}]
  %s1 = inlined_call_operand.vmem [shape: f32[1,32,16], index: 1, kind: input, shape index: {}]
  %s2 = inlined_call_operand.vmem [shape: f32[1,16], index: 2, kind: input, shape index: {}]
  %s3 = inlined_call_operand.vmem [shape: f32[8,64,16], index: 3, kind: output, shape index: {}]
  %s4 = sld [smem:[#allocation0]]
  $region45: #{tpu_custom_call.1} parent=0
    _
  %s6 = ssub.s32 1, %s4
  %s7 = scalar_select 0, %s6, %s4
  loop: start=0, step=1, limit=4
  $region2: #{tpu_custom_call.1} parent=0 // loop_pre_header
    _
  $region3: #{tpu_custom_call.1} parent=0 // loop_header
    %s9 = sphi 0, %s13
    %p10 = scmp.ge.s32.totalorder %s9, 4
    %s19 = sphi 0, %s21
    %s22 = sphi 0, %s19
    %s23 = sphi 0, %s22
    %s39 = sphi 0, %s23
    %s43 = sphi 0, %s43
    %s45 = sphi 0, %s43
    %s46 = sphi 0, %s45
    %s60 = sphi 0, %s46
    %s64 = sphi 0, %s64
    %s66 = sphi 0, %s64
    %s67 = sphi 0, %s66
    %s81 = sphi 0, %s67
    %s87 = sphi 0, %s89
    %s90 = sphi 0, %s87
    %s91 = sphi 0, %s90
    %s107 = sphi 0, %s91
  $region4: #{tpu_custom_call.1} parent=0 // loop_header_branch
    %12 = sbr.rel (%p10) target = $region8
  $region5: #{tpu_custom_call.1} parent=0 // loop_body
    %s14 = ssub.s32 %s9, 1
    %s15 = ssub.s32 %s9, 2
    %s16 = sadd.s32 %s9, 1
    %s17 = ssub.s32 %s9, %s16
    %p18 = scmp.eq.s32.totalorder %s17, 0
    %s20 = sadd.s32 %s19, 1
    %s21 = scalar_select %p18, %s19, %s20
    %p24 = pneg %p18
    %p25 = scmp.eq.s32.totalorder %s9, 1
    %p26 = por %p24, %p25
    %p27 = scmp.ne.s32.totalorder %s19, %s22
    %p28 = scmp.eq.s32.totalorder %s9, 0
    %p29 = por %p27, %p28
    %p30 = scmp.ne.s32.totalorder %s19, %s22
    %p31 = scmp.eq.s32.totalorder %s14, 1
    %p32 = por %p30, %p31
    %p33 = scmp.ne.s32.totalorder %s22, %s23
    %p34 = scmp.eq.s32.totalorder %s14, 0
    %p35 = por %p33, %p34
    %p36 = scmp.ne.s32.totalorder %s22, %s23
    %p37 = scmp.eq.s32.totalorder %s15, 1
    %p38 = por %p36, %p37
    %p40 = scmp.ne.s32.totalorder %s23, %s39
    %p41 = scmp.eq.s32.totalorder %s15, 0
    %p42 = por %p40, %p41
    %s44 = sadd.s32 %s43, 1
    %p47 = scmp.eq.s32.totalorder %s9, 1
    %p48 = scmp.ne.s32.totalorder %s43, %s45
    %p49 = scmp.eq.s32.totalorder %s9, 0
    %p50 = por %p48, %p49
    %p51 = scmp.ne.s32.totalorder %s43, %s45
    %p52 = scmp.eq.s32.totalorder %s14, 1
    %p53 = por %p51, %p52
    %p54 = scmp.ne.s32.totalorder %s45, %s46
    %p55 = scmp.eq.s32.totalorder %s14, 0
    %p56 = por %p54, %p55
    %p57 = scmp.ne.s32.totalorder %s45, %s46
    %p58 = scmp.eq.s32.totalorder %s15, 1
    %p59 = por %p57, %p58
    %p61 = scmp.ne.s32.totalorder %s46, %s60
    %p62 = scmp.eq.s32.totalorder %s15, 0
    %p63 = por %p61, %p62
    %s65 = sadd.s32 %s64, 1
    %p68 = scmp.eq.s32.totalorder %s9, 1
    %p69 = scmp.ne.s32.totalorder %s64, %s66
    %p70 = scmp.eq.s32.totalorder %s9, 0
    %p71 = por %p69, %p70
    %p72 = scmp.ne.s32.totalorder %s64, %s66
    %p73 = scmp.eq.s32.totalorder %s14, 1
    %p74 = por %p72, %p73
    %p75 = scmp.ne.s32.totalorder %s66, %s67
    %p76 = scmp.eq.s32.totalorder %s14, 0
    %p77 = por %p75, %p76
    %p78 = scmp.ne.s32.totalorder %s66, %s67
    %p79 = scmp.eq.s32.totalorder %s15, 1
    %p80 = por %p78, %p79
    %p82 = scmp.ne.s32.totalorder %s67, %s81
    %p83 = scmp.eq.s32.totalorder %s15, 0
    %p84 = por %p82, %p83
    %s85 = ssub.s32 %s9, %s16
    %p86 = scmp.eq.s32.totalorder %s85, 0
    %s88 = sadd.s32 %s87, 1
    %s89 = scalar_select %p86, %s87, %s88
    %p92 = pneg %p86
    %p93 = scmp.eq.s32.totalorder %s9, 1
    %p94 = por %p92, %p93
    %p95 = scmp.ne.s32.totalorder %s87, %s90
    %p96 = scmp.eq.s32.totalorder %s9, 0
    %p97 = por %p95, %p96
    %p98 = scmp.ne.s32.totalorder %s87, %s90
    %p99 = scmp.eq.s32.totalorder %s14, 1
    %p100 = por %p98, %p99
    %p101 = scmp.ne.s32.totalorder %s90, %s91
    %p102 = scmp.eq.s32.totalorder %s14, 0
    %p103 = por %p101, %p102
    %p104 = scmp.ne.s32.totalorder %s90, %s91
    %p105 = scmp.eq.s32.totalorder %s15, 1
    %p106 = por %p104, %p105
    %p108 = scmp.ne.s32.totalorder %s91, %s107
    %p109 = scmp.eq.s32.totalorder %s15, 0
    %p110 = por %p108, %p109
    %p111 = scmp.le.s32.totalorder 1, %s9
    %p112 = scmp.lt.s32.totalorder %s9, 3
    %p113 = pnand %p111, %p112
    %p114 = pneg %p113
    // Predicated region
    $region9: #{tpu_custom_call.1} parent=5 // pred_check
      _
    $region10: #{tpu_custom_call.1} parent=5 // pred_check_branch
      %116 = sbr.rel (%p113) target = $region12
    $region11: #{tpu_custom_call.1} parent=5 // pred_region
      %s117 = ssub.s32 %s9, 1
      // Predicated region
      $region13: #{tpu_custom_call.1} parent=11 // pred_check
        %p118 = pneg %p56
      $region14: #{tpu_custom_call.1} parent=11 // pred_check_branch
        %120 = sbr.rel (%p118) target = $region16
      $region15: #{tpu_custom_call.1} parent=11 // pred_region
        _
      $region16: #{tpu_custom_call.1} parent=11 // pred_fallthru
        _
      // Predicated region
      $region17: #{tpu_custom_call.1} parent=11 // pred_check
        %p121 = pneg %p77
      $region18: #{tpu_custom_call.1} parent=11 // pred_check_branch
        %123 = sbr.rel (%p121) target = $region20
      $region19: #{tpu_custom_call.1} parent=11 // pred_region
        _
      $region20: #{tpu_custom_call.1} parent=11 // pred_fallthru
        _
    $region12: #{tpu_custom_call.1} parent=5 // pred_fallthru
      _
    %p124 = scmp.lt.s32.totalorder %s9, 2
    // Predicated region
    $region21: #{tpu_custom_call.1} parent=5 // pred_check
      %p125 = pneg %p124
    $region22: #{tpu_custom_call.1} parent=5 // pred_check_branch
      %127 = sbr.rel (%p125) target = $region24
    $region23: #{tpu_custom_call.1} parent=5 // pred_region
      // Predicated region
      $region25: #{tpu_custom_call.1} parent=23 // pred_check
        %p128 = pneg %p29
      $region26: #{tpu_custom_call.1} parent=23 // pred_check_branch
        %130 = sbr.rel (%p128) target = $region28
      $region27: #{tpu_custom_call.1} parent=23 // pred_region
        %s131 = smul.u32 4, %s9
        %p132 = scmp.lt.s32.totalorder %s131, 7
        %s133 = scalar_select %p132, %s131, 7
        %s134 = smul.addr %s133, 8
        %s135 = smul.addr %s134, 8
        %s136 = scalar_lea.vmem %s0, %s135
        %s137 = smul.u32 4, %s9
      $region28: #{tpu_custom_call.1} parent=23 // pred_fallthru
        _
    $region24: #{tpu_custom_call.1} parent=5 // pred_fallthru
      _
    %p138 = scmp.le.s32.totalorder 1, %s9
    %p139 = scmp.lt.s32.totalorder %s9, 3
    %p140 = pnand %p138, %p139
    %p141 = pneg %p140
    // Predicated region
    $region29: #{tpu_custom_call.1} parent=5 // pred_check
      _
    $region30: #{tpu_custom_call.1} parent=5 // pred_check_branch
      %143 = sbr.rel (%p140) target = $region32
    $region31: #{tpu_custom_call.1} parent=5 // pred_region
      %s144 = ssub.s32 %s9, 1
      %s145 = smul.u32 4, %s14
      %p146 = scmp.lt.s32.totalorder %s145, 7
      %s147 = scalar_select %p146, %s145, 7
      %s148 = smul.addr %s147, 8
      %s149 = smul.addr %s148, 8
      %s150 = scalar_lea.vmem %s0, %s149
      %p151 = pneg %p35
      %p152 = pneg %p32
      %p153 = pneg %p56
      %p154 = pneg %p53
      %p155 = pneg %p77
      %p156 = pneg %p74
      %p157 = pneg %p103
      %p158 = pneg %p100
      %s159 = smul.u32 4, %s14
      %p160 = scmp.lt.s32.totalorder %s159, 7
      %s161 = scalar_select %p160, %s159, 7
      %s162 = smul.addr %s161, 8
      %s163 = smul.addr %s162, 8
      %s164 = scalar_lea.vmem %s3, %s163
      %s165 = smul.u32 4, %s14
      %p166 = scmp.lt.s32.totalorder %s165, 7
      %s167 = scalar_select %p166, %s165, 7
      %s168 = smul.addr %s167, 8
      %s169 = smul.addr %s168, 8
      %s170 = scalar_lea.vmem %s0, %s169
      %s171 = smul.u32 4, %s14
      %s172 = smul.u32 4, %s14
      %p173 = scmp.lt.s32.totalorder %s172, 7
      %s174 = scalar_select %p173, %s172, 7
      %s175 = smul.addr %s174, 8
      %s176 = smul.addr %s175, 8
      %s177 = scalar_lea.vmem %s3, %s176
      %s178 = smul.u32 4, %s14
      %v179 = vld [vmem:[%s170] sm:$0xff]
      %v180 = vld [vmem:[%s170 + $0x8] sm:$0xff]
      %v181 = vld [vmem:[%s170 + $0x10] sm:$0xff]
      %v182 = vld [vmem:[%s170 + $0x18] sm:$0xff]
      %v183 = vld [vmem:[%s170 + $0x20] sm:$0xff]
      %v184 = vld [vmem:[%s170 + $0x28] sm:$0xff]
      %v185 = vld [vmem:[%s170 + $0x30] sm:$0xff]
      %v186 = vld [vmem:[%s170 + $0x38] sm:$0xff]
      %v187 = vld [vmem:[%s170 + $0x40] sm:$0xff]
      %v188 = vld [vmem:[%s170 + $0x48] sm:$0xff]
      %v189 = vld [vmem:[%s170 + $0x50] sm:$0xff]
      %v190 = vld [vmem:[%s170 + $0x58] sm:$0xff]
      %v191 = vld [vmem:[%s170 + $0x60] sm:$0xff]
      %v192 = vld [vmem:[%s170 + $0x68] sm:$0xff]
      %v193 = vld [vmem:[%s170 + $0x70] sm:$0xff]
      %v194 = vld [vmem:[%s170 + $0x78] sm:$0xff]
      %v195 = vld [vmem:[%s170 + $0x80] sm:$0xff]
      %v196 = vld [vmem:[%s170 + $0x88] sm:$0xff]
      %v197 = vld [vmem:[%s170 + $0x90] sm:$0xff]
      %v198 = vld [vmem:[%s170 + $0x98] sm:$0xff]
      %v199 = vld [vmem:[%s170 + $0xa0] sm:$0xff]
      %v200 = vld [vmem:[%s170 + $0xa8] sm:$0xff]
      %v201 = vld [vmem:[%s170 + $0xb0] sm:$0xff]
      %v202 = vld [vmem:[%s170 + $0xb8] sm:$0xff]
      %v203 = vld [vmem:[%s170 + $0xc0] sm:$0xff]
      %v204 = vld [vmem:[%s170 + $0xc8] sm:$0xff]
      %v205 = vld [vmem:[%s170 + $0xd0] sm:$0xff]
      %v206 = vld [vmem:[%s170 + $0xd8] sm:$0xff]
      %v207 = vld [vmem:[%s170 + $0xe0] sm:$0xff]
      %v208 = vld [vmem:[%s170 + $0xe8] sm:$0xff]
      %v209 = vld [vmem:[%s170 + $0xf0] sm:$0xff]
      %v210 = vld [vmem:[%s170 + $0xf8] sm:$0xff]
      %v211 = vld [vmem:[%s1] sm:$0xff]
      %v212 = vld [vmem:[%s1 + $0x8] sm:$0xff]
      %v213 = vld [vmem:[%s1 + $0x10] sm:$0xff]
      %v214 = vld [vmem:[%s1 + $0x18] sm:$0xff]
      %v215 = vld [vmem:[%s2] sm:$0x1]
      %v217 = vlaneseq
      %v218 = vshrl.u32 %v217, 7
      %v219 = vsub.s32 0, %v218
      %v220 = vrot.slane %v215, %v219
      %vm222 = vcmask 261120
      %v224 = vsel %vm222, %v179, 0
      %v227 = vsel %vm222, %v180, 0
      %v230 = vsel %vm222, %v181, 0
      %v233 = vsel %vm222, %v182, 0
      %v236 = vsel %vm222, %v183, 0
      %v239 = vsel %vm222, %v184, 0
      %v242 = vsel %vm222, %v185, 0
      %v245 = vsel %vm222, %v186, 0
      %v248 = vsel %vm222, %v187, 0
      %v251 = vsel %vm222, %v188, 0
      %v254 = vsel %vm222, %v189, 0
      %v257 = vsel %vm222, %v190, 0
      %v260 = vsel %vm222, %v191, 0
      %v263 = vsel %vm222, %v192, 0
      %v266 = vsel %vm222, %v193, 0
      %v269 = vsel %vm222, %v194, 0
      %v272 = vsel %vm222, %v195, 0
      %v275 = vsel %vm222, %v196, 0
      %v278 = vsel %vm222, %v197, 0
      %v281 = vsel %vm222, %v198, 0
      %v284 = vsel %vm222, %v199, 0
      %v287 = vsel %vm222, %v200, 0
      %v290 = vsel %vm222, %v201, 0
      %v293 = vsel %vm222, %v202, 0
      %v296 = vsel %vm222, %v203, 0
      %v299 = vsel %vm222, %v204, 0
      %v302 = vsel %vm222, %v205, 0
      %v305 = vsel %vm222, %v206, 0
      %v308 = vsel %vm222, %v207, 0
      %v311 = vsel %vm222, %v208, 0
      %v314 = vsel %vm222, %v209, 0
      %v317 = vsel %vm222, %v210, 0
      %319 = vmatprep.subr.mxu0 0.0
      %320 = vmatpush1.msra.mxu0 %v211
      %321 = vmatprep.subr.mxu0 0.0
      %322 = vmatpush1.msra.mxu0 %v212
      %323 = vmatprep.subr.mxu0 0.0
      %324 = vmatpush1.msra.mxu0 %v213
      %325 = vmatprep.subr.mxu0 0.0
      %326 = vmatpush1.msra.mxu0 %v214
      %327 = vmatprep.subr.mxu0 0.0
      %328 = vmatpush1.msra.mxu0 0.0
      %329 = vmatprep.subr.mxu0 0.0
      %330 = vmatpush1.msra.mxu0 0.0
      %331 = vmatprep.subr.mxu0 0.0
      %332 = vmatpush1.msra.mxu0 0.0
      %333 = vmatprep.subr.mxu0 0.0
      %334 = vmatpush1.msra.mxu0 0.0
      %335 = vmatprep.subr.mxu0 0.0
      %336 = vmatpush1.msra.mxu0 0.0
      %337 = vmatprep.subr.mxu0 0.0
      %338 = vmatpush1.msra.mxu0 0.0
      %339 = vmatprep.subr.mxu0 0.0
      %340 = vmatpush1.msra.mxu0 0.0
      %341 = vmatprep.subr.mxu0 0.0
      %342 = vmatpush1.msra.mxu0 0.0
      %343 = vmatprep.subr.mxu0 0.0
      %344 = vmatpush1.msra.mxu0 0.0
      %345 = vmatprep.subr.mxu0 0.0
      %346 = vmatpush1.msra.mxu0 0.0
      %347 = vmatprep.subr.mxu0 0.0
      %348 = vmatpush1.msra.mxu0 0.0
      %349 = vmatprep.subr.mxu0 0.0
      %350 = vmatpush1.msra.mxu0 0.0
      %351 = vmatprep.subr.mxu0 0.0
      %352 = vmatpush1.msra.mxu0 0.0
      %353 = vmatprep.subr.mxu0 0.0
      %354 = vmatpush1.msra.mxu0 0.0
      %355 = vmatprep.subr.mxu0 0.0
      %356 = vmatpush1.msra.mxu0 0.0
      %357 = vmatprep.subr.mxu0 0.0
      %358 = vmatpush1.msra.mxu0 0.0
      %359 = vmatprep.subr.mxu0 0.0
      %360 = vmatpush1.msra.mxu0 0.0
      %361 = vmatprep.subr.mxu0 0.0
      %362 = vmatpush1.msra.mxu0 0.0
      %363 = vmatprep.subr.mxu0 0.0
      %364 = vmatpush1.msra.mxu0 0.0
      %365 = vmatprep.subr.mxu0 0.0
      %366 = vmatpush1.msra.mxu0 0.0
      %367 = vmatprep.subr.mxu0 0.0
      %368 = vmatpush1.msra.mxu0 0.0
      %369 = vmatprep.subr.mxu0 0.0
      %370 = vmatpush1.msra.mxu0 0.0
      %371 = vmatprep.subr.mxu0 0.0
      %372 = vmatpush1.msra.mxu0 0.0
      %373 = vmatprep.subr.mxu0 0.0
      %374 = vmatpush1.msra.mxu0 0.0
      %375 = vmatprep.subr.mxu0 0.0
      %376 = vmatpush1.msra.mxu0 0.0
      %377 = vmatprep.subr.mxu0 0.0
      %378 = vmatpush1.msra.mxu0 0.0
      %379 = vmatprep.subr.mxu0 0.0
      %380 = vmatpush1.msra.mxu0 0.0
      %381 = vmatprep.subr.mxu0 0.0
      %382 = vmatpush1.msra.mxu0 0.0
      %383 = vmatprep.mubr.f32.mxu0 0.0
      %384 = vmatmul.mubr.f32.gmra.mrb[0].mxu0 %v224
      %v385 = vpop.f32.mrb[0].mxu0
      %v386 = vadd.f32 %v220, %v385
      %v387 = vpop.f32.mrb[0].mxu0
      %388 = vmatprep.mubr.f32.mxu0 0.0
      %389 = vmatmul.mubr.f32.gmra.mrb[0].mxu0 %v227
      %v390 = vpop.f32.mrb[0].mxu0
      %v391 = vadd.f32 %v220, %v390
      %v392 = vpop.f32.mrb[0].mxu0
      %393 = vmatprep.mubr.f32.mxu0 0.0
      %394 = vmatmul.mubr.f32.gmra.mrb[0].mxu0 %v230
      %v395 = vpop.f32.mrb[0].mxu0
      %v396 = vadd.f32 %v220, %v395
      %v397 = vpop.f32.mrb[0].mxu0
      %398 = vmatprep.mubr.f32.mxu0 0.0
      %399 = vmatmul.mubr.f32.gmra.mrb[0].mxu0 %v233
      %v400 = vpop.f32.mrb[0].mxu0
      %v401 = vadd.f32 %v220, %v400
      %v402 = vpop.f32.mrb[0].mxu0
      %403 = vmatprep.mubr.f32.mxu0 0.0
      %404 = vmatmul.mubr.f32.gmra.mrb[0].mxu0 %v236
      %v405 = vpop.f32.mrb[0].mxu0
      %v406 = vadd.f32 %v220, %v405
      %v407 = vpop.f32.mrb[0].mxu0
      %408 = vmatprep.mubr.f32.mxu0 0.0
      %409 = vmatmul.mubr.f32.gmra.mrb[0].mxu0 %v239
      %v410 = vpop.f32.mrb[0].mxu0
      %v411 = vadd.f32 %v220, %v410
      %v412 = vpop.f32.mrb[0].mxu0
      %413 = vmatprep.mubr.f32.mxu0 0.0
      %414 = vmatmul.mubr.f32.gmra.mrb[0].mxu0 %v242
      %v415 = vpop.f32.mrb[0].mxu0
      %v416 = vadd.f32 %v220, %v415
      %v417 = vpop.f32.mrb[0].mxu0
      %418 = vmatprep.mubr.f32.mxu0 0.0
      %419 = vmatmul.mubr.f32.gmra.mrb[0].mxu0 %v245
      %v420 = vpop.f32.mrb[0].mxu0
      %v421 = vadd.f32 %v220, %v420
      %v422 = vpop.f32.mrb[0].mxu0
      %423 = vmatprep.mubr.f32.mxu0 0.0
      %424 = vmatmul.mubr.f32.gmra.mrb[0].mxu0 %v248
      %v425 = vpop.f32.mrb[0].mxu0
      %v426 = vadd.f32 %v220, %v425
      %v427 = vpop.f32.mrb[0].mxu0
      %428 = vmatprep.mubr.f32.mxu0 0.0
      %429 = vmatmul.mubr.f32.gmra.mrb[0].mxu0 %v251
      %v430 = vpop.f32.mrb[0].mxu0
      %v431 = vadd.f32 %v220, %v430
      %v432 = vpop.f32.mrb[0].mxu0
      %433 = vmatprep.mubr.f32.mxu0 0.0
      %434 = vmatmul.mubr.f32.gmra.mrb[0].mxu0 %v254
      %v435 = vpop.f32.mrb[0].mxu0
      %v436 = vadd.f32 %v220, %v435
      %v437 = vpop.f32.mrb[0].mxu0
      %438 = vmatprep.mubr.f32.mxu0 0.0
      %439 = vmatmul.mubr.f32.gmra.mrb[0].mxu0 %v257
      %v440 = vpop.f32.mrb[0].mxu0
      %v441 = vadd.f32 %v220, %v440
      %v442 = vpop.f32.mrb[0].mxu0
      %443 = vmatprep.mubr.f32.mxu0 0.0
      %444 = vmatmul.mubr.f32.gmra.mrb[0].mxu0 %v260
      %v445 = vpop.f32.mrb[0].mxu0
      %v446 = vadd.f32 %v220, %v445
      %v447 = vpop.f32.mrb[0].mxu0
      %448 = vmatprep.mubr.f32.mxu0 0.0
      %449 = vmatmul.mubr.f32.gmra.mrb[0].mxu0 %v263
      %v450 = vpop.f32.mrb[0].mxu0
      %v451 = vadd.f32 %v220, %v450
      %v452 = vpop.f32.mrb[0].mxu0
      %453 = vmatprep.mubr.f32.mxu0 0.0
      %454 = vmatmul.mubr.f32.gmra.mrb[0].mxu0 %v266
      %v455 = vpop.f32.mrb[0].mxu0
      %v456 = vadd.f32 %v220, %v455
      %v457 = vpop.f32.mrb[0].mxu0
      %458 = vmatprep.mubr.f32.mxu0 0.0
      %459 = vmatmul.mubr.f32.gmra.mrb[0].mxu0 %v269
      %v460 = vpop.f32.mrb[0].mxu0
      %v461 = vadd.f32 %v220, %v460
      %v462 = vpop.f32.mrb[0].mxu0
      %463 = vmatprep.mubr.f32.mxu0 0.0
      %464 = vmatmul.mubr.f32.gmra.mrb[0].mxu0 %v272
      %v465 = vpop.f32.mrb[0].mxu0
      %v466 = vadd.f32 %v220, %v465
      %v467 = vpop.f32.mrb[0].mxu0
      %468 = vmatprep.mubr.f32.mxu0 0.0
      %469 = vmatmul.mubr.f32.gmra.mrb[0].mxu0 %v275
      %v470 = vpop.f32.mrb[0].mxu0
      %v471 = vadd.f32 %v220, %v470
      %v472 = vpop.f32.mrb[0].mxu0
      %473 = vmatprep.mubr.f32.mxu0 0.0
      %474 = vmatmul.mubr.f32.gmra.mrb[0].mxu0 %v278
      %v475 = vpop.f32.mrb[0].mxu0
      %v476 = vadd.f32 %v220, %v475
      %v477 = vpop.f32.mrb[0].mxu0
      %478 = vmatprep.mubr.f32.mxu0 0.0
      %479 = vmatmul.mubr.f32.gmra.mrb[0].mxu0 %v281
      %v480 = vpop.f32.mrb[0].mxu0
      %v481 = vadd.f32 %v220, %v480
      %v482 = vpop.f32.mrb[0].mxu0
      %483 = vmatprep.mubr.f32.mxu0 0.0
      %484 = vmatmul.mubr.f32.gmra.mrb[0].mxu0 %v284
      %v485 = vpop.f32.mrb[0].mxu0
      %v486 = vadd.f32 %v220, %v485
      %v487 = vpop.f32.mrb[0].mxu0
      %488 = vmatprep.mubr.f32.mxu0 0.0
      %489 = vmatmul.mubr.f32.gmra.mrb[0].mxu0 %v287
      %v490 = vpop.f32.mrb[0].mxu0
      %v491 = vadd.f32 %v220, %v490
      %v492 = vpop.f32.mrb[0].mxu0
      %493 = vmatprep.mubr.f32.mxu0 0.0
      %494 = vmatmul.mubr.f32.gmra.mrb[0].mxu0 %v290
      %v495 = vpop.f32.mrb[0].mxu0
      %v496 = vadd.f32 %v220, %v495
      %v497 = vpop.f32.mrb[0].mxu0
      %498 = vmatprep.mubr.f32.mxu0 0.0
      %499 = vmatmul.mubr.f32.gmra.mrb[0].mxu0 %v293
      %v500 = vpop.f32.mrb[0].mxu0
      %v501 = vadd.f32 %v220, %v500
      %v502 = vpop.f32.mrb[0].mxu0
      %503 = vmatprep.mubr.f32.mxu0 0.0
      %504 = vmatmul.mubr.f32.gmra.mrb[0].mxu0 %v296
      %v505 = vpop.f32.mrb[0].mxu0
      %v506 = vadd.f32 %v220, %v505
      %v507 = vpop.f32.mrb[0].mxu0
      %508 = vmatprep.mubr.f32.mxu0 0.0
      %509 = vmatmul.mubr.f32.gmra.mrb[0].mxu0 %v299
      %v510 = vpop.f32.mrb[0].mxu0
      %v511 = vadd.f32 %v220, %v510
      %v512 = vpop.f32.mrb[0].mxu0
      %513 = vmatprep.mubr.f32.mxu0 0.0
      %514 = vmatmul.mubr.f32.gmra.mrb[0].mxu0 %v302
      %v515 = vpop.f32.mrb[0].mxu0
      %v516 = vadd.f32 %v220, %v515
      %v517 = vpop.f32.mrb[0].mxu0
      %518 = vmatprep.mubr.f32.mxu0 0.0
      %519 = vmatmul.mubr.f32.gmra.mrb[0].mxu0 %v305
      %v520 = vpop.f32.mrb[0].mxu0
      %v521 = vadd.f32 %v220, %v520
      %v522 = vpop.f32.mrb[0].mxu0
      %523 = vmatprep.mubr.f32.mxu0 0.0
      %524 = vmatmul.mubr.f32.gmra.mrb[0].mxu0 %v308
      %v525 = vpop.f32.mrb[0].mxu0
      %v526 = vadd.f32 %v220, %v525
      %v527 = vpop.f32.mrb[0].mxu0
      %528 = vmatprep.mubr.f32.mxu0 0.0
      %529 = vmatmul.mubr.f32.gmra.mrb[0].mxu0 %v311
      %v530 = vpop.f32.mrb[0].mxu0
      %v531 = vadd.f32 %v220, %v530
      %v532 = vpop.f32.mrb[0].mxu0
      %533 = vmatprep.mubr.f32.mxu0 0.0
      %534 = vmatmul.mubr.f32.gmra.mrb[0].mxu0 %v314
      %v535 = vpop.f32.mrb[0].mxu0
      %v536 = vadd.f32 %v220, %v535
      %v537 = vpop.f32.mrb[0].mxu0
      %538 = vmatprep.mubr.f32.mxu0 0.0
      %539 = vmatmul.mubr.f32.gmra.mrb[0].mxu0 %v317
      %v540 = vpop.f32.mrb[0].mxu0
      %v541 = vadd.f32 %v220, %v540
      %v542 = vpop.f32.mrb[0].mxu0
      %543 = vdwg.mxu0
      %vm544 = vcmask 130048
      %v545 = vsel %vm544, %v386, -inf
      %v546 = vsel %vm544, %v391, -inf
      %v547 = vmax.f32 %v545, %v546
      %v548 = vsel %vm544, %v396, -inf
      %v549 = vmax.f32 %v547, %v548
      %v550 = vsel %vm544, %v401, -inf
      %v551 = vmax.f32 %v549, %v550
      %v552 = vsel %vm544, %v406, -inf
      %v553 = vmax.f32 %v551, %v552
      %v554 = vsel %vm544, %v411, -inf
      %v555 = vmax.f32 %v553, %v554
      %v556 = vsel %vm544, %v416, -inf
      %v557 = vmax.f32 %v555, %v556
      %v558 = vsel %vm544, %v421, -inf
      %v559 = vmax.f32 %v557, %v558
      %v560 = vrot.slane %v559, 4
      %v561 = vmax.f32 %v559, %v560
      %v562 = vrot.slane %v561, 2
      %v563 = vmax.f32 %v561, %v562
      %v564 = vrot.slane %v563, 1
      %v565 = vmax.f32 %v563, %v564
      %v566 = vsel %vm544, %v426, -inf
      %v567 = vsel %vm544, %v431, -inf
      %v568 = vmax.f32 %v566, %v567
      %v569 = vsel %vm544, %v436, -inf
      %v570 = vmax.f32 %v568, %v569
      %v571 = vsel %vm544, %v441, -inf
      %v572 = vmax.f32 %v570, %v571
      %v573 = vsel %vm544, %v446, -inf
      %v574 = vmax.f32 %v572, %v573
      %v575 = vsel %vm544, %v451, -inf
      %v576 = vmax.f32 %v574, %v575
      %v577 = vsel %vm544, %v456, -inf
      %v578 = vmax.f32 %v576, %v577
      %v579 = vsel %vm544, %v461, -inf
      %v580 = vmax.f32 %v578, %v579
      %v581 = vrot.slane %v580, 4
      %v582 = vmax.f32 %v580, %v581
      %v583 = vrot.slane %v582, 2
      %v584 = vmax.f32 %v582, %v583
      %v585 = vrot.slane %v584, 1
      %v586 = vmax.f32 %v584, %v585
      %v587 = vsel %vm544, %v466, -inf
      %v588 = vsel %vm544, %v471, -inf
      %v589 = vmax.f32 %v587, %v588
      %v590 = vsel %vm544, %v476, -inf
      %v591 = vmax.f32 %v589, %v590
      %v592 = vsel %vm544, %v481, -inf
      %v593 = vmax.f32 %v591, %v592
      %v594 = vsel %vm544, %v486, -inf
      %v595 = vmax.f32 %v593, %v594
      %v596 = vsel %vm544, %v491, -inf
      %v597 = vmax.f32 %v595, %v596
      %v598 = vsel %vm544, %v496, -inf
      %v599 = vmax.f32 %v597, %v598
      %v600 = vsel %vm544, %v501, -inf
      %v601 = vmax.f32 %v599, %v600
      %v602 = vrot.slane %v601, 4
      %v603 = vmax.f32 %v601, %v602
      %v604 = vrot.slane %v603, 2
      %v605 = vmax.f32 %v603, %v604
      %v606 = vrot.slane %v605, 1
      %v607 = vmax.f32 %v605, %v606
      %v608 = vsel %vm544, %v506, -inf
      %v609 = vsel %vm544, %v511, -inf
      %v610 = vmax.f32 %v608, %v609
      %v611 = vsel %vm544, %v516, -inf
      %v612 = vmax.f32 %v610, %v611
      %v613 = vsel %vm544, %v521, -inf
      %v614 = vmax.f32 %v612, %v613
      %v615 = vsel %vm544, %v526, -inf
      %v616 = vmax.f32 %v614, %v615
      %v617 = vsel %vm544, %v531, -inf
      %v618 = vmax.f32 %v616, %v617
      %v619 = vsel %vm544, %v536, -inf
      %v620 = vmax.f32 %v618, %v619
      %v621 = vsel %vm544, %v541, -inf
      %v622 = vmax.f32 %v620, %v621
      %v623 = vrot.slane %v622, 4
      %v624 = vmax.f32 %v622, %v623
      %v625 = vrot.slane %v624, 2
      %v626 = vmax.f32 %v624, %v625
      %v627 = vrot.slane %v626, 1
      %v628 = vmax.f32 %v626, %v627
      %v629 = vsub.f32 %v386, %v565
      %v630 = vsub.f32 %v391, %v565
      %v631 = vsub.f32 %v396, %v565
      %v632 = vsub.f32 %v401, %v565
      %v633 = vsub.f32 %v406, %v565
      %v634 = vsub.f32 %v411, %v565
      %v635 = vsub.f32 %v416, %v565
      %v636 = vsub.f32 %v421, %v565
      %v637 = vsub.f32 %v426, %v586
      %v638 = vsub.f32 %v431, %v586
      %v639 = vsub.f32 %v436, %v586
      %v640 = vsub.f32 %v441, %v586
      %v641 = vsub.f32 %v446, %v586
      %v642 = vsub.f32 %v451, %v586
      %v643 = vsub.f32 %v456, %v586
      %v644 = vsub.f32 %v461, %v586
      %v645 = vsub.f32 %v466, %v607
      %v646 = vsub.f32 %v471, %v607
      %v647 = vsub.f32 %v476, %v607
      %v648 = vsub.f32 %v481, %v607
      %v649 = vsub.f32 %v486, %v607
      %v650 = vsub.f32 %v491, %v607
      %v651 = vsub.f32 %v496, %v607
      %v652 = vsub.f32 %v501, %v607
      %v653 = vsub.f32 %v506, %v628
      %v654 = vsub.f32 %v511, %v628
      %v655 = vsub.f32 %v516, %v628
      %v656 = vsub.f32 %v521, %v628
      %v657 = vsub.f32 %v526, %v628
      %v658 = vsub.f32 %v531, %v628
      %v659 = vsub.f32 %v536, %v628
      %v660 = vsub.f32 %v541, %v628
      %v661 = vmul.f32 %v629, 1.442695
      %v662 = vpow.pop %v661
      %v663 = vmul.f32 %v630, 1.442695
      %v664 = vpow.pop %v663
      %v665 = vmul.f32 %v631, 1.442695
      %v666 = vpow.pop %v665
      %v667 = vmul.f32 %v632, 1.442695
      %v668 = vpow.pop %v667
      %v669 = vmul.f32 %v633, 1.442695
      %v670 = vpow.pop %v669
      %v671 = vmul.f32 %v634, 1.442695
      %v672 = vpow.pop %v671
      %v673 = vmul.f32 %v635, 1.442695
      %v674 = vpow.pop %v673
      %v675 = vmul.f32 %v636, 1.442695
      %v676 = vpow.pop %v675
      %v677 = vmul.f32 %v637, 1.442695
      %v678 = vpow.pop %v677
      %v679 = vmul.f32 %v638, 1.442695
      %v680 = vpow.pop %v679
      %v681 = vmul.f32 %v639, 1.442695
      %v682 = vpow.pop %v681
      %v683 = vmul.f32 %v640, 1.442695
      %v684 = vpow.pop %v683
      %v685 = vmul.f32 %v641, 1.442695
      %v686 = vpow.pop %v685
      %v687 = vmul.f32 %v642, 1.442695
      %v688 = vpow.pop %v687
      %v689 = vmul.f32 %v643, 1.442695
      %v690 = vpow.pop %v689
      %v691 = vmul.f32 %v644, 1.442695
      %v692 = vpow.pop %v691
      %v693 = vmul.f32 %v645, 1.442695
      %v694 = vpow.pop %v693
      %v695 = vmul.f32 %v646, 1.442695
      %v696 = vpow.pop %v695
      %v697 = vmul.f32 %v647, 1.442695
      %v698 = vpow.pop %v697
      %v699 = vmul.f32 %v648, 1.442695
      %v700 = vpow.pop %v699
      %v701 = vmul.f32 %v649, 1.442695
      %v702 = vpow.pop %v701
      %v703 = vmul.f32 %v650, 1.442695
      %v704 = vpow.pop %v703
      %v705 = vmul.f32 %v651, 1.442695
      %v706 = vpow.pop %v705
      %v707 = vmul.f32 %v652, 1.442695
      %v708 = vpow.pop %v707
      %v709 = vmul.f32 %v653, 1.442695
      %v710 = vpow.pop %v709
      %v711 = vmul.f32 %v654, 1.442695
      %v712 = vpow.pop %v711
      %v713 = vmul.f32 %v655, 1.442695
      %v714 = vpow.pop %v713
      %v715 = vmul.f32 %v656, 1.442695
      %v716 = vpow.pop %v715
      %v717 = vmul.f32 %v657, 1.442695
      %v718 = vpow.pop %v717
      %v719 = vmul.f32 %v658, 1.442695
      %v720 = vpow.pop %v719
      %v721 = vmul.f32 %v659, 1.442695
      %v722 = vpow.pop %v721
      %v723 = vmul.f32 %v660, 1.442695
      %v724 = vpow.pop %v723
      %v725 = vsel %vm544, %v662, 0.0
      %v726 = vsel %vm544, %v664, 0.0
      %v727 = vadd.f32 %v725, %v726
      %v728 = vsel %vm544, %v666, 0.0
      %v729 = vadd.f32 %v727, %v728
      %v730 = vsel %vm544, %v668, 0.0
      %v731 = vadd.f32 %v729, %v730
      %v732 = vsel %vm544, %v670, 0.0
      %v733 = vadd.f32 %v731, %v732
      %v734 = vsel %vm544, %v672, 0.0
      %v735 = vadd.f32 %v733, %v734
      %v736 = vsel %vm544, %v674, 0.0
      %v737 = vadd.f32 %v735, %v736
      %v738 = vsel %vm544, %v676, 0.0
      %v739 = vadd.f32 %v737, %v738
      %v740 = vrot.slane %v739, 4
      %v741 = vadd.f32 %v739, %v740
      %v742 = vrot.slane %v741, 2
      %v743 = vadd.f32 %v741, %v742
      %v744 = vrot.slane %v743, 1
      %v745 = vadd.f32 %v743, %v744
      %v746 = vsel %vm544, %v678, 0.0
      %v747 = vsel %vm544, %v680, 0.0
      %v748 = vadd.f32 %v746, %v747
      %v749 = vsel %vm544, %v682, 0.0
      %v750 = vadd.f32 %v748, %v749
      %v751 = vsel %vm544, %v684, 0.0
      %v752 = vadd.f32 %v750, %v751
      %v753 = vsel %vm544, %v686, 0.0
      %v754 = vadd.f32 %v752, %v753
      %v755 = vsel %vm544, %v688, 0.0
      %v756 = vadd.f32 %v754, %v755
      %v757 = vsel %vm544, %v690, 0.0
      %v758 = vadd.f32 %v756, %v757
      %v759 = vsel %vm544, %v692, 0.0
      %v760 = vadd.f32 %v758, %v759
      %v761 = vrot.slane %v760, 4
      %v762 = vadd.f32 %v760, %v761
      %v763 = vrot.slane %v762, 2
      %v764 = vadd.f32 %v762, %v763
      %v765 = vrot.slane %v764, 1
      %v766 = vadd.f32 %v764, %v765
      %v767 = vsel %vm544, %v694, 0.0
      %v768 = vsel %vm544, %v696, 0.0
      %v769 = vadd.f32 %v767, %v768
      %v770 = vsel %vm544, %v698, 0.0
      %v771 = vadd.f32 %v769, %v770
      %v772 = vsel %vm544, %v700, 0.0
      %v773 = vadd.f32 %v771, %v772
      %v774 = vsel %vm544, %v702, 0.0
      %v775 = vadd.f32 %v773, %v774
      %v776 = vsel %vm544, %v704, 0.0
      %v777 = vadd.f32 %v775, %v776
      %v778 = vsel %vm544, %v706, 0.0
      %v779 = vadd.f32 %v777, %v778
      %v780 = vsel %vm544, %v708, 0.0
      %v781 = vadd.f32 %v779, %v780
      %v782 = vrot.slane %v781, 4
      %v783 = vadd.f32 %v781, %v782
      %v784 = vrot.slane %v783, 2
      %v785 = vadd.f32 %v783, %v784
      %v786 = vrot.slane %v785, 1
      %v787 = vadd.f32 %v785, %v786
      %v788 = vsel %vm544, %v710, 0.0
      %v789 = vsel %vm544, %v712, 0.0
      %v790 = vadd.f32 %v788, %v789
      %v791 = vsel %vm544, %v714, 0.0
      %v792 = vadd.f32 %v790, %v791
      %v793 = vsel %vm544, %v716, 0.0
      %v794 = vadd.f32 %v792, %v793
      %v795 = vsel %vm544, %v718, 0.0
      %v796 = vadd.f32 %v794, %v795
      %v797 = vsel %vm544, %v720, 0.0
      %v798 = vadd.f32 %v796, %v797
      %v799 = vsel %vm544, %v722, 0.0
      %v800 = vadd.f32 %v798, %v799
      %v801 = vsel %vm544, %v724, 0.0
      %v802 = vadd.f32 %v800, %v801
      %v803 = vrot.slane %v802, 4
      %v804 = vadd.f32 %v802, %v803
      %v805 = vrot.slane %v804, 2
      %v806 = vadd.f32 %v804, %v805
      %v807 = vrot.slane %v806, 1
      %v808 = vadd.f32 %v806, %v807
      %v809 = vrcp.pop %v745
      %v810 = vrcp.pop %v766
      %v811 = vrcp.pop %v787
      %v812 = vrcp.pop %v808
      %v813 = vmul.f32 %v662, %v809
      %v814 = vmul.f32 %v664, %v809
      %v815 = vmul.f32 %v666, %v809
      %v816 = vmul.f32 %v668, %v809
      %v817 = vmul.f32 %v670, %v809
      %v818 = vmul.f32 %v672, %v809
      %v819 = vmul.f32 %v674, %v809
      %v820 = vmul.f32 %v676, %v809
      %v821 = vmul.f32 %v678, %v810
      %v822 = vmul.f32 %v680, %v810
      %v823 = vmul.f32 %v682, %v810
      %v824 = vmul.f32 %v684, %v810
      %v825 = vmul.f32 %v686, %v810
      %v826 = vmul.f32 %v688, %v810
      %v827 = vmul.f32 %v690, %v810
      %v828 = vmul.f32 %v692, %v810
      %v829 = vmul.f32 %v694, %v811
      %v830 = vmul.f32 %v696, %v811
      %v831 = vmul.f32 %v698, %v811
      %v832 = vmul.f32 %v700, %v811
      %v833 = vmul.f32 %v702, %v811
      %v834 = vmul.f32 %v704, %v811
      %v835 = vmul.f32 %v706, %v811
      %v836 = vmul.f32 %v708, %v811
      %v837 = vmul.f32 %v710, %v812
      %v838 = vmul.f32 %v712, %v812
      %v839 = vmul.f32 %v714, %v812
      %v840 = vmul.f32 %v716, %v812
      %v841 = vmul.f32 %v718, %v812
      %v842 = vmul.f32 %v720, %v812
      %v843 = vmul.f32 %v722, %v812
      %v844 = vmul.f32 %v724, %v812
      %845 = vst.msk [vmem:[%s177] sm:$0xff] %vm544, %v813
      %846 = vst.msk [vmem:[%s177 + $0x8] sm:$0xff] %vm544, %v814
      %847 = vst.msk [vmem:[%s177 + $0x10] sm:$0xff] %vm544, %v815
      %848 = vst.msk [vmem:[%s177 + $0x18] sm:$0xff] %vm544, %v816
      %849 = vst.msk [vmem:[%s177 + $0x20] sm:$0xff] %vm544, %v817
      %850 = vst.msk [vmem:[%s177 + $0x28] sm:$0xff] %vm544, %v818
      %851 = vst.msk [vmem:[%s177 + $0x30] sm:$0xff] %vm544, %v819
      %852 = vst.msk [vmem:[%s177 + $0x38] sm:$0xff] %vm544, %v820
      %853 = vst.msk [vmem:[%s177 + $0x40] sm:$0xff] %vm544, %v821
      %854 = vst.msk [vmem:[%s177 + $0x48] sm:$0xff] %vm544, %v822
      %855 = vst.msk [vmem:[%s177 + $0x50] sm:$0xff] %vm544, %v823
      %856 = vst.msk [vmem:[%s177 + $0x58] sm:$0xff] %vm544, %v824
      %857 = vst.msk [vmem:[%s177 + $0x60] sm:$0xff] %vm544, %v825
      %858 = vst.msk [vmem:[%s177 + $0x68] sm:$0xff] %vm544, %v826
      %859 = vst.msk [vmem:[%s177 + $0x70] sm:$0xff] %vm544, %v827
      %860 = vst.msk [vmem:[%s177 + $0x78] sm:$0xff] %vm544, %v828
      %861 = vst.msk [vmem:[%s177 + $0x80] sm:$0xff] %vm544, %v829
      %862 = vst.msk [vmem:[%s177 + $0x88] sm:$0xff] %vm544, %v830
      %863 = vst.msk [vmem:[%s177 + $0x90] sm:$0xff] %vm544, %v831
      %864 = vst.msk [vmem:[%s177 + $0x98] sm:$0xff] %vm544, %v832
      %865 = vst.msk [vmem:[%s177 + $0xa0] sm:$0xff] %vm544, %v833
      %866 = vst.msk [vmem:[%s177 + $0xa8] sm:$0xff] %vm544, %v834
      %867 = vst.msk [vmem:[%s177 + $0xb0] sm:$0xff] %vm544, %v835
      %868 = vst.msk [vmem:[%s177 + $0xb8] sm:$0xff] %vm544, %v836
      %869 = vst.msk [vmem:[%s177 + $0xc0] sm:$0xff] %vm544, %v837
      %870 = vst.msk [vmem:[%s177 + $0xc8] sm:$0xff] %vm544, %v838
      %871 = vst.msk [vmem:[%s177 + $0xd0] sm:$0xff] %vm544, %v839
      %872 = vst.msk [vmem:[%s177 + $0xd8] sm:$0xff] %vm544, %v840
      %873 = vst.msk [vmem:[%s177 + $0xe0] sm:$0xff] %vm544, %v841
      %874 = vst.msk [vmem:[%s177 + $0xe8] sm:$0xff] %vm544, %v842
      %875 = vst.msk [vmem:[%s177 + $0xf0] sm:$0xff] %vm544, %v843
      %876 = vst.msk [vmem:[%s177 + $0xf8] sm:$0xff] %vm544, %v844
      %s877 = smul.u32 4, %s14
      %p878 = scmp.lt.s32.totalorder %s877, 7
      %s879 = scalar_select %p878, %s877, 7
      %s880 = smul.addr %s879, 8
      %s881 = smul.addr %s880, 8
      %s882 = scalar_lea.vmem %s3, %s881
      // Predicated region
      $region33: #{tpu_custom_call.1} parent=31 // pred_check
        %p883 = pneg %p100
      $region34: #{tpu_custom_call.1} parent=31 // pred_check_branch
        %885 = sbr.rel (%p883) target = $region36
      $region35: #{tpu_custom_call.1} parent=31 // pred_region
        %s886 = smul.u32 4, %s14
      $region36: #{tpu_custom_call.1} parent=31 // pred_fallthru
        _
    $region32: #{tpu_custom_call.1} parent=5 // pred_fallthru
      _
    %p887 = scmp.le.s32.totalorder 2, %s9
    // Predicated region
    $region37: #{tpu_custom_call.1} parent=5 // pred_check
      %p888 = pneg %p887
    $region38: #{tpu_custom_call.1} parent=5 // pred_check_branch
      %890 = sbr.rel (%p888) target = $region40
    $region39: #{tpu_custom_call.1} parent=5 // pred_region
      %s891 = ssub.s32 %s9, 2
      // Predicated region
      $region41: #{tpu_custom_call.1} parent=39 // pred_check
        %p892 = pneg %p106
      $region42: #{tpu_custom_call.1} parent=39 // pred_check_branch
        %894 = sbr.rel (%p892) target = $region44
      $region43: #{tpu_custom_call.1} parent=39 // pred_region
        %s895 = smul.u32 4, %s15
        %p896 = scmp.lt.s32.totalorder %s895, 7
        %s897 = scalar_select %p896, %s895, 7
        %s898 = smul.addr %s897, 8
        %s899 = smul.addr %s898, 8
        %s900 = scalar_lea.vmem %s3, %s899
      $region44: #{tpu_custom_call.1} parent=39 // pred_fallthru
        _
    $region40: #{tpu_custom_call.1} parent=5 // pred_fallthru
      _
  $region6: #{tpu_custom_call.1} parent=0 // loop_footer
    %s13 = sadd.s32 1, %s9
  $region7: #{tpu_custom_call.1} parent=0 // loop_footer_branch
    %8 = sbr.rel target = $region3
  $region8: #{tpu_custom_call.1} parent=0 // loop_exit
    _

</llo_original>
